<compile_context>
chip_gen: v7x
topology: tpu7x:2x2x1
jax: 0.10.0
libtpu: 0.0.40
codegen_flags: <defaults>
</compile_context>

<pallas_src>
import functools

import jax
import jax.numpy as jnp
from jax import lax
from jax.experimental import pallas as pl
from jax.experimental.pallas import tpu as pltpu

_NEG = -1e30  # plain Python float -> jaxpr literal, NOT a captured constant


def _atloss_kernel(logits_ref, labels_ref, out_ref, *, block_b, num_classes,
                   batch):
    logits = logits_ref[...].astype(jnp.float32)        # [block_b, C]
    labels = labels_ref[...].astype(jnp.float32)        # [block_b, C]

    col = lax.broadcasted_iota(jnp.int32, (block_b, num_classes), 1)
    is_th = col == 0                                     # threshold class
    raw_pos = labels > 0.0                               # may include col 0

    # Masked logits via selects; masked entries underflow to 0 in the softmax.
    logit1 = jnp.where(raw_pos | is_th, logits, _NEG)    # positives + threshold
    logit2 = jnp.where(raw_pos & jnp.logical_not(is_th), _NEG, logits)

    m1 = jnp.max(logit1, axis=-1, keepdims=True)
    lse1 = m1 + jnp.log(jnp.sum(jnp.exp(logit1 - m1), axis=-1, keepdims=True))
    m2 = jnp.max(logit2, axis=-1, keepdims=True)
    lse2 = m2 + jnp.log(jnp.sum(jnp.exp(logit2 - m2), axis=-1, keepdims=True))

    # loss1 = lse1 * sum(lab) - sum(logits * lab) with lab = labels, col 0 -> 0.
    # Column 0 is removed algebraically instead of with a full-tile select.
    lab0 = labels[:, 0:1]
    logit0 = logits[:, 0:1]
    sum_lab = jnp.sum(labels, axis=-1, keepdims=True) - lab0
    sum_wlogit = jnp.sum(logits * labels, axis=-1, keepdims=True) - logit0 * lab0
    loss1 = lse1 * sum_lab - sum_wlogit
    # loss2 = -log_softmax(logit2)[:, 0]; logit2[:, 0] == logits[:, 0]
    loss2 = lse2 - logit0

    # Rows past the true batch (partial boundary block) hold undefined data;
    # they never mix with valid rows (all reductions are per-row), so masking
    # the final per-row loss is sufficient.
    row = lax.broadcasted_iota(jnp.int32, (block_b, 1), 0)
    valid = (pl.program_id(0) * block_b + row) < batch
    out_ref[...] = jnp.where(valid, loss1 + loss2, 0.0)


def _round_up(x, m):
    return ((x + m - 1) // m) * m


def _choose_block_b(batch, num_classes, in_bytes_per_row):
    # ~6 MiB of raw input per grid step (dtype-aware: bf16/int8 inputs get
    # proportionally more rows), double-buffered by the pipeline.
    rows_from_input = (6 * 1024 * 1024) // max(in_bytes_per_row, 1)
    # Cap the in-kernel f32 temporaries (~6 tile-sized f32 arrays: casts,
    # logit1/logit2, products) at ~16 MiB so v7x's 64 MiB/TC VMEM is safe.
    rows_from_temps = (16 * 1024 * 1024) // (24 * num_classes)
    rows = max(8, min(rows_from_input, rows_from_temps))
    rows = max(8, (rows // 8) * 8)
    # Keep >= 2 grid steps whenever possible so both v7x TensorCores get work.
    if batch > 8:
        rows = min(rows, _round_up(-(-batch // 2), 8))
    rows = min(rows, _round_up(batch, 8))
    return max(8, rows)


def atloss_pallas(logits, labels, *, block_b=None):
    """ATLoss_1.forward(logits, labels) -> scalar loss (float32).

    Inputs keep their dtypes (f32 / bf16 logits, f32 / int / bool labels);
    the kernel casts to f32 internally.  No host-side padding or casting.
    """
    B, C = logits.shape
    assert labels.shape == (B, C)

    in_bytes_per_row = C * (logits.dtype.itemsize + labels.dtype.itemsize)
    if block_b is None:
        block_b = _choose_block_b(B, C, in_bytes_per_row)
    block_b = max(8, _round_up(block_b, 8))
    num_tiles = pl.cdiv(B, block_b)
    b_pad = num_tiles * block_b  # output rows; padded rows are written as 0

    kernel = functools.partial(_atloss_kernel, block_b=block_b, num_classes=C,
                               batch=B)
    per_row = pl.pallas_call(
        kernel,
        out_shape=jax.ShapeDtypeStruct((b_pad, 1), jnp.float32),
        grid=(num_tiles,),
        in_specs=[
            pl.BlockSpec((block_b, C), lambda i: (i, 0)),
            pl.BlockSpec((block_b, C), lambda i: (i, 0)),
        ],
        out_specs=pl.BlockSpec((block_b, 1), lambda i: (i, 0)),
        compiler_params=pltpu.CompilerParams(
            dimension_semantics=("parallel",),
            vmem_limit_bytes=40 * 1024 * 1024,
        ),
        cost_estimate=pl.CostEstimate(
            flops=12 * B * C,
            transcendentals=2 * B * C,
            bytes_accessed=B * in_bytes_per_row + 4 * b_pad,
        ),
    )(logits, labels)
    # Padded rows contribute exactly 0, so the mean is sum / true batch size.
    return jnp.sum(per_row) / jnp.float32(B)


def atloss_ref(logits, labels):
    """Pure-JAX reference mirroring the PyTorch module exactly."""
    logits = logits.astype(jnp.float32)
    labels = labels.astype(jnp.float32)
    th_label = jnp.zeros_like(labels).at[:, 0].set(1.0)
    labels = labels.at[:, 0].set(0.0)
    p_mask = labels + th_label
    n_mask = 1.0 - labels
    logit1 = logits - (1.0 - p_mask) * 1e30
    loss1 = -jnp.sum(jax.nn.log_softmax(logit1, axis=-1) * labels, axis=1)
    logit2 = logits - (1.0 - n_mask) * 1e30
    loss2 = -jnp.sum(jax.nn.log_softmax(logit2, axis=-1) * th_label, axis=1)
    return jnp.mean(loss1 + loss2)


if __name__ == "__main__":
    B, C = 20, 97  # small, unaligned on purpose: exercises boundary blocks
    key = jax.random.PRNGKey(0)
    k1, k2 = jax.random.split(key)

    logits = jax.random.normal(k1, (B, C), dtype=jnp.float32)
    # multi-hot labels in {0, 1}; column 0 content is irrelevant (forced to 0)
    labels = (jax.random.uniform(k2, (B, C)) < 0.15).astype(jnp.float32)

    ref = atloss_ref(logits, labels)

    # Multi-tile path with a partial last tile (tiles of 8 rows -> 8, 8, 4).
    loss_tiled = atloss_pallas(logits, labels, block_b=8)
    jax.block_until_ready(loss_tiled)
    assert jnp.allclose(loss_tiled, ref, rtol=1e-5, atol=1e-5), (loss_tiled, ref)

    # Default (auto) tile-size path (>= 2 tiles so both v7x cores are used).
    loss_auto = atloss_pallas(logits, labels)
    jax.block_until_ready(loss_auto)
    assert jnp.allclose(loss_auto, ref, rtol=1e-5, atol=1e-5), (loss_auto, ref)

    print("KERNEL_OK")
</pallas_src>

<mosaic_0001>
module attributes {stable_mosaic.version = 11 : i64} {
  func.func @_atloss_kernel(%arg0: i32, %arg1: memref<8x97xf32, #tpu.memory_space<vmem>>, %arg2: memref<8x97xf32, #tpu.memory_space<vmem>>, %arg3: memref<8x1xf32, #tpu.memory_space<vmem>>) attributes {dimension_semantics = [#tpu.dimension_semantics<parallel>], iteration_bounds = array<i64: 3>, scalar_prefetch = 0 : i64, scratch_operands = 0 : i64, tpu.core_type = #tpu.core_type<tc>, window_params = [{transform_indices = @transform_0, window_bounds = array<i64: 8, 97>}, {transform_indices = @transform_1, window_bounds = array<i64: 8, 97>}, {transform_indices = @transform_2, window_bounds = array<i64: 8, 1>}]} {
    %c0 = arith.constant 0 : index
    %c0_0 = arith.constant 0 : index
    %0 = vector.load %arg1[%c0, %c0_0] : memref<8x97xf32, #tpu.memory_space<vmem>>, vector<8x97xf32>
    %c0_1 = arith.constant 0 : index
    %c0_2 = arith.constant 0 : index
    %1 = vector.load %arg2[%c0_1, %c0_2] : memref<8x97xf32, #tpu.memory_space<vmem>>, vector<8x97xf32>
    %2 = tpu.iota {dimensions = array<i32: 1>} : vector<8x97xi32>
    %c0_i32 = arith.constant 0 : i32
    %3 = vector.broadcast %c0_i32 : i32 to vector<8x97xi32>
    %4 = arith.cmpi eq, %2, %3 : vector<8x97xi32>
    %cst = arith.constant 0.000000e+00 : f32
    %5 = vector.broadcast %cst : f32 to vector<8x97xf32>
    %6 = arith.cmpf ogt, %1, %5 : vector<8x97xf32>
    %7 = arith.ori %6, %4 : vector<8x97xi1>
    %cst_3 = arith.constant -1.000000e+30 : f32
    %8 = vector.broadcast %cst_3 : f32 to vector<8x97xf32>
    %9 = arith.select %7, %0, %8 : vector<8x97xi1>, vector<8x97xf32>
    %cst_4 = arith.constant dense<true> : vector<8x97xi1>
    %10 = arith.xori %4, %cst_4 : vector<8x97xi1>
    %11 = arith.andi %6, %10 : vector<8x97xi1>
    %cst_5 = arith.constant -1.000000e+30 : f32
    %12 = vector.broadcast %cst_5 : f32 to vector<8x97xf32>
    %13 = arith.select %11, %12, %0 : vector<8x97xi1>, vector<8x97xf32>
    %cst_6 = arith.constant dense<0xFF800000> : vector<8xf32>
    %14 = vector.multi_reduction <maximumf>, %9, %cst_6 [1] : vector<8x97xf32> to vector<8xf32>
    %15 = vector.shape_cast %14 : vector<8xf32> to vector<8x1xf32>
    %16 = vector.broadcast %15 : vector<8x1xf32> to vector<8x97xf32>
    %17 = arith.subf %9, %16 : vector<8x97xf32>
    %18 = math.exp %17 : vector<8x97xf32>
    %cst_7 = arith.constant dense<0.000000e+00> : vector<8xf32>
    %19 = vector.multi_reduction <add>, %18, %cst_7 [1] : vector<8x97xf32> to vector<8xf32>
    %20 = vector.shape_cast %19 : vector<8xf32> to vector<8x1xf32>
    %21 = math.log %20 : vector<8x1xf32>
    %22 = arith.addf %15, %21 : vector<8x1xf32>
    %cst_8 = arith.constant dense<0xFF800000> : vector<8xf32>
    %23 = vector.multi_reduction <maximumf>, %13, %cst_8 [1] : vector<8x97xf32> to vector<8xf32>
    %24 = vector.shape_cast %23 : vector<8xf32> to vector<8x1xf32>
    %25 = vector.broadcast %24 : vector<8x1xf32> to vector<8x97xf32>
    %26 = arith.subf %13, %25 : vector<8x97xf32>
    %27 = math.exp %26 : vector<8x97xf32>
    %cst_9 = arith.constant dense<0.000000e+00> : vector<8xf32>
    %28 = vector.multi_reduction <add>, %27, %cst_9 [1] : vector<8x97xf32> to vector<8xf32>
    %29 = vector.shape_cast %28 : vector<8xf32> to vector<8x1xf32>
    %30 = math.log %29 : vector<8x1xf32>
    %31 = arith.addf %24, %30 : vector<8x1xf32>
    %32 = vector.extract_strided_slice %1 {offsets = [0, 0], sizes = [8, 1], strides = [1, 1]} : vector<8x97xf32> to vector<8x1xf32>
    %33 = vector.extract_strided_slice %0 {offsets = [0, 0], sizes = [8, 1], strides = [1, 1]} : vector<8x97xf32> to vector<8x1xf32>
    %cst_10 = arith.constant dense<0.000000e+00> : vector<8xf32>
    %34 = vector.multi_reduction <add>, %1, %cst_10 [1] : vector<8x97xf32> to vector<8xf32>
    %35 = vector.shape_cast %34 : vector<8xf32> to vector<8x1xf32>
    %36 = arith.subf %35, %32 : vector<8x1xf32>
    %37 = arith.mulf %0, %1 : vector<8x97xf32>
    %cst_11 = arith.constant dense<0.000000e+00> : vector<8xf32>
    %38 = vector.multi_reduction <add>, %37, %cst_11 [1] : vector<8x97xf32> to vector<8xf32>
    %39 = vector.shape_cast %38 : vector<8xf32> to vector<8x1xf32>
    %40 = arith.mulf %33, %32 : vector<8x1xf32>
    %41 = arith.subf %39, %40 : vector<8x1xf32>
    %42 = arith.mulf %22, %36 : vector<8x1xf32>
    %43 = arith.subf %42, %41 : vector<8x1xf32>
    %44 = arith.subf %31, %33 : vector<8x1xf32>
    %45 = tpu.iota {dimensions = array<i32: 0>} : vector<8x1xi32>
    %c8_i32 = arith.constant 8 : i32
    %46 = arith.muli %arg0, %c8_i32 : i32
    %47 = vector.broadcast %46 : i32 to vector<8x1xi32>
    %48 = arith.addi %47, %45 : vector<8x1xi32>
    %c20_i32 = arith.constant 20 : i32
    %49 = vector.broadcast %c20_i32 : i32 to vector<8x1xi32>
    %50 = arith.cmpi slt, %48, %49 : vector<8x1xi32>
    %51 = arith.addf %43, %44 : vector<8x1xf32>
    %cst_12 = arith.constant 0.000000e+00 : f32
    %52 = vector.broadcast %cst_12 : f32 to vector<8x1xf32>
    %53 = arith.select %50, %51, %52 : vector<8x1xi1>, vector<8x1xf32>
    %c0_13 = arith.constant 0 : index
    %c0_14 = arith.constant 0 : index
    %54 = vector.load %arg3[%c0_13, %c0_14] : memref<8x1xf32, #tpu.memory_space<vmem>>, vector<8x1xf32>
    tpu.vector_store %arg3[%c0_13, %c0_14], %53 {strides = array<i32>} : memref<8x1xf32, #tpu.memory_space<vmem>>, vector<8x1xf32>,
    return
  }
  func.func @transform_0(%arg0: i32) -> (i32, i32) {
    %c0_i32 = arith.constant 0 : i32
    %c0_i32_0 = arith.constant 0 : i32
    return %arg0, %c0_i32 : i32, i32
  }
  func.func @transform_1(%arg0: i32) -> (i32, i32) {
    %c0_i32 = arith.constant 0 : i32
    %c0_i32_0 = arith.constant 0 : i32
    return %arg0, %c0_i32 : i32, i32
  }
  func.func @transform_2(%arg0: i32) -> (i32, i32) {
    %c0_i32 = arith.constant 0 : i32
    %c0_i32_0 = arith.constant 0 : i32
    return %arg0, %c0_i32 : i32, i32
  }
}

</mosaic_0001>

<llo_original>
// kernel: tpu_custom_call.1
$region0: #{tpu_custom_call.1}
  #allocation0 [shape = 'u32[]', space=smem, size = 0x4, offset = 0x4, fixed_abs, tag = 'smem constant byte address 0x4 - core index']
  #allocation1 [shape = 'u32[144,128]{1,0:T(1,128)}', space=vmem, size = 0x12000, scoped, tag = 'internal scratch']
  %s0 = inlined_call_operand.hbm [shape: f32[20,97], index: 0, kind: input, shape index: {}]
  %s1 = inlined_call_operand.hbm [shape: f32[20,97], index: 1, kind: input, shape index: {}]
  %s2 = inlined_call_operand.vmem [shape: f32[24,1], index: 2, kind: output, shape index: {}]
  %s3 = sld [smem:[#allocation0]]
  $region49: #{tpu_custom_call.1} parent=0
    _
  %s5 = ssub.s32 1, %s3
  %s6 = scalar_select 0, %s5, %s3
  $region1: #{tpu_custom_call.1} parent=0
    #allocation2 [shape = 'u8[8192]{0}', space=vmem, size = 0x2000, scoped, tag = 'input window, operand 0']
    #allocation3 [shape = 's32[2]{0}', space=sflag, size = 0x8, scoped, tag = 'scoped memory for tpu_custom_call.1']
    #allocation4 [shape = 'u8[8192]{0}', space=vmem, size = 0x2000, scoped, tag = 'input window, operand 1']
    #allocation5 [shape = 's32[2]{0}', space=sflag, size = 0x8, scoped, tag = 'scoped memory for tpu_custom_call.1']
    %7 = vsyncpa [#allocation3], 0
    %s8 = scalar_lea.sflag [#allocation3], 1
    %9 = vsyncpa %s8, 0
    %10 = vsyncpa [#allocation5], 0
    %s11 = scalar_lea.sflag [#allocation5], 1
    %12 = vsyncpa %s11, 0
    loop: start=0, step=1, limit=5
    $region2: #{tpu_custom_call.1} parent=1 // loop_pre_header
      _
    $region3: #{tpu_custom_call.1} parent=1 // loop_header
      %s14 = sphi 0, %s18
      %p15 = scmp.ge.s32.totalorder %s14, 5
      %s24 = sphi 0, %s26
      %s27 = sphi 0, %s24
      %s28 = sphi 0, %s27
      %s44 = sphi 0, %s28
      %s50 = sphi 0, %s52
      %s53 = sphi 0, %s50
      %s54 = sphi 0, %s53
      %s70 = sphi 0, %s54
      %s76 = sphi 0, %s78
      %s79 = sphi 0, %s76
      %s80 = sphi 0, %s79
      %s96 = sphi 0, %s80
    $region4: #{tpu_custom_call.1} parent=1 // loop_header_branch
      %17 = sbr.rel (%p15) target = $region8
    $region5: #{tpu_custom_call.1} parent=1 // loop_body
      %s19 = ssub.s32 %s14, 1
      %s20 = ssub.s32 %s14, 2
      %s21 = sadd.s32 %s14, 1
      %s22 = ssub.s32 %s14, %s21
      %p23 = scmp.eq.s32.totalorder %s22, 0
      %s25 = sadd.s32 %s24, 1
      %s26 = scalar_select %p23, %s24, %s25
      %p29 = pneg %p23
      %p30 = scmp.eq.s32.totalorder %s14, 2
      %p31 = por %p29, %p30
      %p32 = scmp.ne.s32.totalorder %s24, %s27
      %p33 = scmp.eq.s32.totalorder %s14, 0
      %p34 = por %p32, %p33
      %p35 = scmp.ne.s32.totalorder %s24, %s27
      %p36 = scmp.eq.s32.totalorder %s19, 2
      %p37 = por %p35, %p36
      %p38 = scmp.ne.s32.totalorder %s27, %s28
      %p39 = scmp.eq.s32.totalorder %s19, 0
      %p40 = por %p38, %p39
      %p41 = scmp.ne.s32.totalorder %s27, %s28
      %p42 = scmp.eq.s32.totalorder %s20, 2
      %p43 = por %p41, %p42
      %p45 = scmp.ne.s32.totalorder %s28, %s44
      %p46 = scmp.eq.s32.totalorder %s20, 0
      %p47 = por %p45, %p46
      %s48 = ssub.s32 %s14, %s21
      %p49 = scmp.eq.s32.totalorder %s48, 0
      %s51 = sadd.s32 %s50, 1
      %s52 = scalar_select %p49, %s50, %s51
      %p55 = pneg %p49
      %p56 = scmp.eq.s32.totalorder %s14, 2
      %p57 = por %p55, %p56
      %p58 = scmp.ne.s32.totalorder %s50, %s53
      %p59 = scmp.eq.s32.totalorder %s14, 0
      %p60 = por %p58, %p59
      %p61 = scmp.ne.s32.totalorder %s50, %s53
      %p62 = scmp.eq.s32.totalorder %s19, 2
      %p63 = por %p61, %p62
      %p64 = scmp.ne.s32.totalorder %s53, %s54
      %p65 = scmp.eq.s32.totalorder %s19, 0
      %p66 = por %p64, %p65
      %p67 = scmp.ne.s32.totalorder %s53, %s54
      %p68 = scmp.eq.s32.totalorder %s20, 2
      %p69 = por %p67, %p68
      %p71 = scmp.ne.s32.totalorder %s54, %s70
      %p72 = scmp.eq.s32.totalorder %s20, 0
      %p73 = por %p71, %p72
      %s74 = ssub.s32 %s14, %s21
      %p75 = scmp.eq.s32.totalorder %s74, 0
      %s77 = sadd.s32 %s76, 1
      %s78 = scalar_select %p75, %s76, %s77
      %p81 = pneg %p75
      %p82 = scmp.eq.s32.totalorder %s14, 2
      %p83 = por %p81, %p82
      %p84 = scmp.ne.s32.totalorder %s76, %s79
      %p85 = scmp.eq.s32.totalorder %s14, 0
      %p86 = por %p84, %p85
      %p87 = scmp.ne.s32.totalorder %s76, %s79
      %p88 = scmp.eq.s32.totalorder %s19, 2
      %p89 = por %p87, %p88
      %p90 = scmp.ne.s32.totalorder %s79, %s80
      %p91 = scmp.eq.s32.totalorder %s19, 0
      %p92 = por %p90, %p91
      %p93 = scmp.ne.s32.totalorder %s79, %s80
      %p94 = scmp.eq.s32.totalorder %s20, 2
      %p95 = por %p93, %p94
      %p97 = scmp.ne.s32.totalorder %s80, %s96
      %p98 = scmp.eq.s32.totalorder %s20, 0
      %p99 = por %p97, %p98
      %p100 = scmp.le.s32.totalorder 1, %s14
      %p101 = scmp.lt.s32.totalorder %s14, 4
      %p102 = pnand %p100, %p101
      %p103 = pneg %p102
      // Predicated region
      $region9: #{tpu_custom_call.1} parent=5 // pred_check
        _
      $region10: #{tpu_custom_call.1} parent=5 // pred_check_branch
        %105 = sbr.rel (%p102) target = $region12
      $region11: #{tpu_custom_call.1} parent=5 // pred_region
        %s106 = ssub.s32 %s14, 1
      $region12: #{tpu_custom_call.1} parent=5 // pred_fallthru
        _
      %p107 = scmp.lt.s32.totalorder %s14, 3
      // Predicated region
      $region13: #{tpu_custom_call.1} parent=5 // pred_check
        %p108 = pneg %p107
      $region14: #{tpu_custom_call.1} parent=5 // pred_check_branch
        %110 = sbr.rel (%p108) target = $region16
      $region15: #{tpu_custom_call.1} parent=5 // pred_region
        // Predicated region
        $region17: #{tpu_custom_call.1} parent=15 // pred_check
          %p111 = pneg %p34
        $region18: #{tpu_custom_call.1} parent=15 // pred_check_branch
          %113 = sbr.rel (%p111) target = $region20
        $region19: #{tpu_custom_call.1} parent=15 // pred_region
          %s114 = sand.u32 %s24, 1
          %s115 = scalar_lea.sflag [#allocation3], %s114
          %s116 = sand.u32 %s24, 1
          %s117 = smul.addr %s116, 8
          %s118 = scalar_lea.vmem [#allocation2], %s117
          %s120 = ssub.s32 128, 128
          %121 = vsyncadd %s115, %s120
          %s122 = smul.addr %s14, 128
          %s123 = scalar_lea.hbm %s0, %s122
          %s125 = sshll.u32 %s118, 4
          %s126 = int_to_ptr.vmem [resolvable:$true] %s125
          %128 = dma.hbm_to_vmem [thread:$0]  %s123, 128, %s126, %s115
        $region20: #{tpu_custom_call.1} parent=15 // pred_fallthru
          _
        // Predicated region
        $region21: #{tpu_custom_call.1} parent=15 // pred_check
          %p129 = pneg %p60
        $region22: #{tpu_custom_call.1} parent=15 // pred_check_branch
          %131 = sbr.rel (%p129) target = $region24
        $region23: #{tpu_custom_call.1} parent=15 // pred_region
          %s132 = sand.u32 %s50, 1
          %s133 = scalar_lea.sflag [#allocation5], %s132
          %s134 = sand.u32 %s50, 1
          %s135 = smul.addr %s134, 8
          %s136 = scalar_lea.vmem [#allocation4], %s135
          %s138 = ssub.s32 128, 128
          %139 = vsyncadd %s133, %s138
          %s140 = smul.addr %s14, 128
          %s141 = scalar_lea.hbm %s1, %s140
          %s143 = sshll.u32 %s136, 4
          %s144 = int_to_ptr.vmem [resolvable:$true] %s143
          %146 = dma.hbm_to_vmem [thread:$0]  %s141, 128, %s144, %s133
        $region24: #{tpu_custom_call.1} parent=15 // pred_fallthru
          _
      $region16: #{tpu_custom_call.1} parent=5 // pred_fallthru
        _
      %p147 = scmp.le.s32.totalorder 1, %s14
      %p148 = scmp.lt.s32.totalorder %s14, 4
      %p149 = pnand %p147, %p148
      %p150 = pneg %p149
      // Predicated region
      $region25: #{tpu_custom_call.1} parent=5 // pred_check
        _
      $region26: #{tpu_custom_call.1} parent=5 // pred_check_branch
        %152 = sbr.rel (%p149) target = $region28
      $region27: #{tpu_custom_call.1} parent=5 // pred_region
        %s153 = ssub.s32 %s14, 1
        %s154 = sand.u32 %s27, 1
        %s155 = scalar_lea.sflag [#allocation3], %s154
        %s156 = sand.u32 %s27, 1
        %s157 = smul.addr %s156, 8
        %s158 = scalar_lea.vmem [#allocation2], %s157
        // Predicated region
        $region29: #{tpu_custom_call.1} parent=27 // pred_check
          %p159 = pneg %p40
        $region30: #{tpu_custom_call.1} parent=27 // pred_check_branch
          %161 = sbr.rel (%p159) target = $region32
        $region31: #{tpu_custom_call.1} parent=27 // pred_region
          %162 = dma.done %s155, 128
        $region32: #{tpu_custom_call.1} parent=27 // pred_fallthru
          _
        %s163 = sand.u32 %s53, 1
        %s164 = scalar_lea.sflag [#allocation5], %s163
        %s165 = sand.u32 %s53, 1
        %s166 = smul.addr %s165, 8
        %s167 = scalar_lea.vmem [#allocation4], %s166
        // Predicated region
        $region33: #{tpu_custom_call.1} parent=27 // pred_check
          %p168 = pneg %p66
        $region34: #{tpu_custom_call.1} parent=27 // pred_check_branch
          %170 = sbr.rel (%p168) target = $region36
        $region35: #{tpu_custom_call.1} parent=27 // pred_region
          %171 = dma.done %s164, 128
        $region36: #{tpu_custom_call.1} parent=27 // pred_fallthru
          _
        %s172 = sand.u32 %s27, 1
        %s173 = scalar_lea.sflag [#allocation3], %s172
        %s174 = sand.u32 %s27, 1
        %s175 = smul.addr %s174, 8
        %s176 = scalar_lea.vmem [#allocation2], %s175
        %p177 = pneg %p40
        %p178 = pneg %p37
        %s179 = sand.u32 %s53, 1
        %s180 = scalar_lea.sflag [#allocation5], %s179
        %s181 = sand.u32 %s53, 1
        %s182 = smul.addr %s181, 8
        %s183 = scalar_lea.vmem [#allocation4], %s182
        %p184 = pneg %p66
        %p185 = pneg %p63
        %p186 = pneg %p92
        %p187 = pneg %p89
        %p188 = scmp.lt.s32.totalorder %s19, 2
        %s189 = scalar_select %p188, %s19, 2
        %s190 = smul.addr %s189, 8
        %s191 = scalar_lea.vmem %s2, %s190
        %p192 = scmp.lt.s32.totalorder %s19, 2
        %s193 = scalar_select %p192, %s19, 2
        %s194 = smul.addr %s193, 8
        %s195 = scalar_lea.vmem %s2, %s194
        %v196 = vld [vmem:[%s158] sm:$0xff]
        %v197 = vld [vmem:[%s167] sm:$0xff]
        %v198 = vlaneseq
        %v199 = vand.u32 %v198, 127
        %vm200 = vcmp.eq.s32.totalorder %v199, 0
        %vm201 = vcmp.gt.f32.partialorder %v197, 0.0
        %vm202 = vmor %vm201, %vm200
        %v203 = vsel %vm202, %v196, -1e+30
        %vm204 = vmxor %vm200, 1
        %vm205 = vmand %vm201, %vm204
        %v206 = vsel %vm205, -1e+30, %v196
        %vm207 = vcmask 793600
        %v208 = vsel %vm207, %v203, -inf
        %209 = vmax.xlane.f32.xlu0 %v208
        %v210 = vpop.xlane.xlu0 %209
        %v211 = vsub.f32 %v203, %v210
        %v212 = vmul.f32 %v211, 1.442695
        %v213 = vpow.pop %v212
        %v214 = vsel %vm207, %v213, 0.0
        %215 = vadd.xlane.f32.xlu0 %v214
        %v216 = vpop.xlane.xlu0 %215
        %v217 = vlog2.pop %v216
        %v218 = vmul.f32 %v217, 0.6931472
        %v219 = vadd.f32 %v210, %v218
        %v220 = vsel %vm207, %v206, -inf
        %221 = vmax.xlane.f32.xlu0 %v220
        %v222 = vpop.xlane.xlu0 %221
        %v223 = vsub.f32 %v206, %v222
        %v224 = vmul.f32 %v223, 1.442695
        %v225 = vpow.pop %v224
        %v226 = vsel %vm207, %v225, 0.0
        %227 = vadd.xlane.f32.xlu0 %v226
        %v228 = vpop.xlane.xlu0 %227
        %v229 = vlog2.pop %v228
        %v230 = vmul.f32 %v229, 0.6931472
        %v231 = vadd.f32 %v222, %v230
        %v232 = vsel %vm207, %v197, 0.0
        %233 = vadd.xlane.f32.xlu0 %v232
        %v234 = vpop.xlane.xlu0 %233
        %v235 = vsub.f32 %v234, %v197
        %v236 = vmul.f32 %v196, %v197
        %v237 = vsel %vm207, %v236, 0.0
        %238 = vadd.xlane.f32.xlu0 %v237
        %v239 = vpop.xlane.xlu0 %238
        %v240 = vsub.f32 %v239, %v236
        %v241 = vmul.f32 %v219, %v235
        %v242 = vsub.f32 %v241, %v240
        %v243 = vsub.f32 %v231, %v196
        %v244 = vlaneseq
        %v245 = vshrl.u32 %v244, 7
        %s246 = smul.u32 %s19, 8
        %v247 = vstv %s246
        %v248 = vadd.s32 %v247, %v245
        %vm249 = vcmp.lt.s32.totalorder %v248, 20
        %v250 = vadd.f32 %v242, %v243
        %v251 = vsel %vm249, %v250, 0.0
        %vm252 = vcmask 7168
        %253 = vst.msk [vmem:[%s195] sm:$0xff] %vm252, %v251
        %p254 = scmp.lt.s32.totalorder %s19, 2
        %s255 = scalar_select %p254, %s19, 2
        %s256 = smul.addr %s255, 8
        %s257 = scalar_lea.vmem %s2, %s256
        // Predicated region
        $region37: #{tpu_custom_call.1} parent=27 // pred_check
          %p258 = pneg %p89
        $region38: #{tpu_custom_call.1} parent=27 // pred_check_branch
          %260 = sbr.rel (%p258) target = $region40
        $region39: #{tpu_custom_call.1} parent=27 // pred_region
          _
        $region40: #{tpu_custom_call.1} parent=27 // pred_fallthru
          _
      $region28: #{tpu_custom_call.1} parent=5 // pred_fallthru
        _
      %p261 = scmp.le.s32.totalorder 2, %s14
      // Predicated region
      $region41: #{tpu_custom_call.1} parent=5 // pred_check
        %p262 = pneg %p261
      $region42: #{tpu_custom_call.1} parent=5 // pred_check_branch
        %264 = sbr.rel (%p262) target = $region44
      $region43: #{tpu_custom_call.1} parent=5 // pred_region
        %s265 = ssub.s32 %s14, 2
        // Predicated region
        $region45: #{tpu_custom_call.1} parent=43 // pred_check
          %p266 = pneg %p95
        $region46: #{tpu_custom_call.1} parent=43 // pred_check_branch
          %268 = sbr.rel (%p266) target = $region48
        $region47: #{tpu_custom_call.1} parent=43 // pred_region
          %p269 = scmp.lt.s32.totalorder %s20, 2
          %s270 = scalar_select %p269, %s20, 2
          %s271 = smul.addr %s270, 8
          %s272 = scalar_lea.vmem %s2, %s271
        $region48: #{tpu_custom_call.1} parent=43 // pred_fallthru
          _
      $region44: #{tpu_custom_call.1} parent=5 // pred_fallthru
        _
    $region6: #{tpu_custom_call.1} parent=1 // loop_footer
      %s18 = sadd.s32 1, %s14
    $region7: #{tpu_custom_call.1} parent=1 // loop_footer_branch
      %13 = sbr.rel target = $region3
    $region8: #{tpu_custom_call.1} parent=1 // loop_exit
      _
    %273 = vsyncpa [#allocation3], 1
    %s274 = scalar_lea.sflag [#allocation3], 1
    %275 = vsyncpa %s274, 1
    %276 = vsyncpa [#allocation5], 1
    %s277 = scalar_lea.sflag [#allocation5], 1
    %278 = vsyncpa %s277, 1

</llo_original>
